<compile_context>
chip_gen: v5e
topology: v5e:2x2
jax: 0.10.0
libtpu: 0.0.40
codegen_flags: <defaults>
</compile_context>

<pallas_src>
import functools

import jax
import jax.numpy as jnp
from jax import lax
from jax.experimental import pallas as pl
from jax.experimental.pallas import tpu as pltpu


def _cen_orth_kernel(rofs_ref, cen_ref, center_ref, orthabs_ref, *, M):
    """One grid step over a (TB, M, C) slab of batches.

    Writes this step's partial sums:
      center_ref  <- sum_{b,m}      S[b, m, m]
      orthabs_ref <- sum_{b, m!=n} |S[b, m, n]|
    where S[b] = normalize(rofs[b]) @ normalize(centers[b]).T (p=2, dim=-1).
    """
    eps_sq = jnp.float32(1e-24)  # == (1e-12)**2, F.normalize eps on the sum-sq

    r = rofs_ref[...].astype(jnp.float32)   # (TB, M, C)
    c = cen_ref[...].astype(jnp.float32)    # (TB, M, C)

    # Inverse row norms: x / max(||x||, 1e-12) == x * rsqrt(max(sum x^2, 1e-24))
    r_inv = lax.rsqrt(jnp.maximum(jnp.sum(r * r, axis=-1, keepdims=True), eps_sq))
    c_inv = lax.rsqrt(jnp.maximum(jnp.sum(c * c, axis=-1, keepdims=True), eps_sq))

    # Normalize rofs once; centers' normalization is applied post-reduction.
    rn = r * r_inv                                               # (TB, M, C)

    # Diagonal of S, elementwise (no iota / eye mask, no MXU).
    dvals = jnp.sum(rn * c, axis=-1, keepdims=True) * c_inv      # (TB, M, 1)

    # |S| accumulator, seeded with -|diag| so that after the column loop it
    # holds the off-diagonal |S| sums.
    abs_acc = -jnp.abs(dvals)                                    # (TB, M, 1)

    # Static unrolled loop over the M columns of S: lane-dense VPU multiply +
    # lane reduction per column, accumulating |S| on the fly.
    for n in range(M):
        c_col = cen_ref[:, n:n + 1, :].astype(jnp.float32)       # (TB, 1, C)
        col_inv = lax.rsqrt(jnp.maximum(
            jnp.sum(c_col * c_col, axis=-1, keepdims=True), eps_sq))  # (TB,1,1)
        col = jnp.sum(rn * c_col, axis=-1, keepdims=True)        # (TB, M, 1)
        abs_acc = abs_acc + jnp.abs(col) * col_inv

    # Single full reduction per accumulator; write this step's partials.
    center_ref[...] = jnp.zeros((1, 1, 1), jnp.float32) + jnp.sum(dvals)
    orthabs_ref[...] = jnp.zeros((1, 1, 1), jnp.float32) + jnp.sum(abs_acc)


def cen_orth_reg_regularization(rofs, centers, *, base_channels, sigma=2.0,
                                max_block_bytes=2 * 1024 * 1024):
    """rofs, centers: (N, M*C). Returns (center_loss, orth_loss) scalars."""
    del sigma  # unused in the forward pass, kept for signature parity
    N, MC = rofs.shape
    assert MC % base_channels == 0
    M = MC // base_channels
    C = base_channels

    rofs3 = rofs.reshape(N, M, C)
    cen3 = centers.reshape(N, M, C)

    # Batch-tile size: as many batch elements as fit the per-block byte budget.
    itemsize = jnp.dtype(rofs3.dtype).itemsize
    per_batch_bytes = M * C * itemsize
    tb = int(max(1, min(N, max_block_bytes // per_batch_bytes)))
    num_steps = int(pl.cdiv(N, tb))
    n_pad = num_steps * tb
    if n_pad != N:
        # Zero rows normalize to zero (eps clamp) and contribute nothing.
        pad = n_pad - N
        rofs3 = jnp.pad(rofs3, ((0, pad), (0, 0), (0, 0)))
        cen3 = jnp.pad(cen3, ((0, pad), (0, 0), (0, 0)))

    kernel = functools.partial(_cen_orth_kernel, M=M)

    center_parts, orthabs_parts = pl.pallas_call(
        kernel,
        out_shape=(
            jax.ShapeDtypeStruct((num_steps, 1, 1), jnp.float32),
            jax.ShapeDtypeStruct((num_steps, 1, 1), jnp.float32),
        ),
        grid_spec=pltpu.PrefetchScalarGridSpec(
            num_scalar_prefetch=0,
            grid=(num_steps,),
            in_specs=[
                pl.BlockSpec((tb, M, C), lambda b: (b, 0, 0)),
                pl.BlockSpec((tb, M, C), lambda b: (b, 0, 0)),
            ],
            out_specs=[
                pl.BlockSpec((1, 1, 1), lambda b: (b, 0, 0)),
                pl.BlockSpec((1, 1, 1), lambda b: (b, 0, 0)),
            ],
        ),
        compiler_params=pltpu.CompilerParams(
            dimension_semantics=("parallel",),
            vmem_limit_bytes=48 * 1024 * 1024,
        ),
    )(rofs3, cen3)

    # Final tiny reduction + loss normalization outside the kernel.
    center_sum = jnp.sum(center_parts)
    orthabs_sum = jnp.sum(orthabs_parts)
    n = jnp.float32(N)
    mask_pos_sum = jnp.float32(M) + jnp.float32(1e-6)
    mask_neg_sum = jnp.float32(M * M - M) + jnp.float32(1e-6)
    center_loss = 1.0 - center_sum / mask_pos_sum / n
    orth_loss = orthabs_sum / mask_neg_sum / n
    return center_loss, orth_loss


def _reference(rofs, centers, base_channels):
    # Pure-JAX reference mirroring the PyTorch forward.
    N, MC = rofs.shape
    M = MC // base_channels
    r = rofs.reshape(N, M, base_channels).astype(jnp.float32)
    c = centers.reshape(N, M, base_channels).astype(jnp.float32)
    r = r / jnp.maximum(jnp.linalg.norm(r, axis=-1, keepdims=True), 1e-12)
    c = c / jnp.maximum(jnp.linalg.norm(c, axis=-1, keepdims=True), 1e-12)
    s = jnp.einsum("bmc,bnc->bmn", r, c)
    eye = jnp.eye(M, dtype=jnp.float32)[None]
    center_loss = 1.0 - jnp.sum(s * eye) / (jnp.sum(eye) + 1e-6) / N
    orth_loss = jnp.sum(jnp.abs(s * (1.0 - eye))) / (jnp.sum(1.0 - eye) + 1e-6) / N
    return center_loss, orth_loss


if __name__ == "__main__":
    # Small, module-consistent shapes: M=8 regions, C=128 base channels.
    key = jax.random.PRNGKey(0)
    k1, k2, k3, k4 = jax.random.split(key, 4)

    # Case 1: N=2 -> single grid step (whole problem in one tile).
    N, M, C = 2, 8, 128
    rofs = jax.random.normal(k1, (N, M * C), dtype=jnp.float32)
    centers = jax.random.normal(k2, (N, M * C), dtype=jnp.float32)
    center_loss, orth_loss = jax.block_until_ready(
        cen_orth_reg_regularization(rofs, centers, base_channels=C))
    ref_c, ref_o = _reference(rofs, centers, C)
    assert jnp.allclose(center_loss, ref_c, atol=1e-5, rtol=1e-5)
    assert jnp.allclose(orth_loss, ref_o, atol=1e-5, rtol=1e-5)

    # Case 2: N=5 with a tiny block budget to exercise multi-step partial sums
    # and the zero-padding path (tb=2 -> 3 grid steps, 1 padded row).
    N2 = 5
    rofs2 = jax.random.normal(k3, (N2, M * C), dtype=jnp.float32)
    centers2 = jax.random.normal(k4, (N2, M * C), dtype=jnp.float32)
    c2, o2 = jax.block_until_ready(
        cen_orth_reg_regularization(rofs2, centers2, base_channels=C,
                                    max_block_bytes=2 * M * C * 4))
    ref_c2, ref_o2 = _reference(rofs2, centers2, C)
    assert jnp.allclose(c2, ref_c2, atol=1e-5, rtol=1e-5)
    assert jnp.allclose(o2, ref_o2, atol=1e-5, rtol=1e-5)

    print("KERNEL_OK")
</pallas_src>

<mosaic_0001>
module attributes {stable_mosaic.version = 11 : i64} {
  func.func @_cen_orth_kernel(%arg0: i32, %arg1: memref<2x8x128xf32, #tpu.memory_space<vmem>>, %arg2: memref<2x8x128xf32, #tpu.memory_space<vmem>>, %arg3: memref<1x1x1xf32, #tpu.memory_space<vmem>>, %arg4: memref<1x1x1xf32, #tpu.memory_space<vmem>>) attributes {dimension_semantics = [#tpu.dimension_semantics<parallel>], iteration_bounds = array<i64: 1>, scalar_prefetch = 0 : i64, scratch_operands = 0 : i64, tpu.core_type = #tpu.core_type<tc>, window_params = [{transform_indices = @transform_0, window_bounds = array<i64: 2, 8, 128>}, {transform_indices = @transform_1, window_bounds = array<i64: 2, 8, 128>}, {transform_indices = @transform_2, window_bounds = array<i64: 1, 1, 1>}, {transform_indices = @transform_3, window_bounds = array<i64: 1, 1, 1>}]} {
    %c0 = arith.constant 0 : index
    %c0_0 = arith.constant 0 : index
    %c0_1 = arith.constant 0 : index
    %0 = vector.load %arg1[%c0, %c0_0, %c0_1] : memref<2x8x128xf32, #tpu.memory_space<vmem>>, vector<2x8x128xf32>
    %c0_2 = arith.constant 0 : index
    %c0_3 = arith.constant 0 : index
    %c0_4 = arith.constant 0 : index
    %1 = vector.load %arg2[%c0_2, %c0_3, %c0_4] : memref<2x8x128xf32, #tpu.memory_space<vmem>>, vector<2x8x128xf32>
    %2 = arith.mulf %0, %0 : vector<2x8x128xf32>
    %cst = arith.constant dense<0.000000e+00> : vector<2x8xf32>
    %3 = vector.multi_reduction <add>, %2, %cst [2] : vector<2x8x128xf32> to vector<2x8xf32>
    %4 = vector.shape_cast %3 : vector<2x8xf32> to vector<2x8x1xf32>
    %cst_5 = arith.constant 1.000000e-24 : f32
    %5 = vector.broadcast %cst_5 : f32 to vector<2x8x1xf32>
    %6 = arith.maximumf %4, %5 : vector<2x8x1xf32>
    %7 = math.rsqrt %6 : vector<2x8x1xf32>
    %8 = arith.mulf %1, %1 : vector<2x8x128xf32>
    %cst_6 = arith.constant dense<0.000000e+00> : vector<2x8xf32>
    %9 = vector.multi_reduction <add>, %8, %cst_6 [2] : vector<2x8x128xf32> to vector<2x8xf32>
    %10 = vector.shape_cast %9 : vector<2x8xf32> to vector<2x8x1xf32>
    %cst_7 = arith.constant 1.000000e-24 : f32
    %11 = vector.broadcast %cst_7 : f32 to vector<2x8x1xf32>
    %12 = arith.maximumf %10, %11 : vector<2x8x1xf32>
    %13 = math.rsqrt %12 : vector<2x8x1xf32>
    %14 = vector.broadcast %7 : vector<2x8x1xf32> to vector<2x8x128xf32>
    %15 = arith.mulf %0, %14 : vector<2x8x128xf32>
    %16 = arith.mulf %15, %1 : vector<2x8x128xf32>
    %cst_8 = arith.constant dense<0.000000e+00> : vector<2x8xf32>
    %17 = vector.multi_reduction <add>, %16, %cst_8 [2] : vector<2x8x128xf32> to vector<2x8xf32>
    %18 = vector.shape_cast %17 : vector<2x8xf32> to vector<2x8x1xf32>
    %19 = arith.mulf %18, %13 : vector<2x8x1xf32>
    %20 = math.absf %19 : vector<2x8x1xf32>
    %cst_9 = arith.constant 0.000000e+00 : f32
    %21 = vector.broadcast %cst_9 : f32 to vector<2x8x1xf32>
    %22 = arith.subf %21, %20 : vector<2x8x1xf32>
    %c0_10 = arith.constant 0 : index
    %c0_11 = arith.constant 0 : index
    %c0_12 = arith.constant 0 : index
    %23 = vector.load %arg2[%c0_10, %c0_11, %c0_12] : memref<2x8x128xf32, #tpu.memory_space<vmem>>, vector<2x1x128xf32>
    %24 = arith.mulf %23, %23 : vector<2x1x128xf32>
    %cst_13 = arith.constant dense<0.000000e+00> : vector<2x1xf32>
    %25 = vector.multi_reduction <add>, %24, %cst_13 [2] : vector<2x1x128xf32> to vector<2x1xf32>
    %26 = vector.shape_cast %25 : vector<2x1xf32> to vector<2x1x1xf32>
    %cst_14 = arith.constant 1.000000e-24 : f32
    %27 = vector.broadcast %cst_14 : f32 to vector<2x1x1xf32>
    %28 = arith.maximumf %26, %27 : vector<2x1x1xf32>
    %29 = math.rsqrt %28 : vector<2x1x1xf32>
    %30 = vector.broadcast %23 : vector<2x1x128xf32> to vector<2x8x128xf32>
    %31 = arith.mulf %15, %30 : vector<2x8x128xf32>
    %cst_15 = arith.constant dense<0.000000e+00> : vector<2x8xf32>
    %32 = vector.multi_reduction <add>, %31, %cst_15 [2] : vector<2x8x128xf32> to vector<2x8xf32>
    %33 = vector.shape_cast %32 : vector<2x8xf32> to vector<2x8x1xf32>
    %34 = math.absf %33 : vector<2x8x1xf32>
    %35 = vector.broadcast %29 : vector<2x1x1xf32> to vector<2x8x1xf32>
    %36 = arith.mulf %34, %35 : vector<2x8x1xf32>
    %37 = arith.addf %22, %36 : vector<2x8x1xf32>
    %c0_16 = arith.constant 0 : index
    %c1 = arith.constant 1 : index
    %c0_17 = arith.constant 0 : index
    %38 = vector.load %arg2[%c0_16, %c1, %c0_17] : memref<2x8x128xf32, #tpu.memory_space<vmem>>, vector<2x1x128xf32>
    %39 = arith.mulf %38, %38 : vector<2x1x128xf32>
    %cst_18 = arith.constant dense<0.000000e+00> : vector<2x1xf32>
    %40 = vector.multi_reduction <add>, %39, %cst_18 [2] : vector<2x1x128xf32> to vector<2x1xf32>
    %41 = vector.shape_cast %40 : vector<2x1xf32> to vector<2x1x1xf32>
    %cst_19 = arith.constant 1.000000e-24 : f32
    %42 = vector.broadcast %cst_19 : f32 to vector<2x1x1xf32>
    %43 = arith.maximumf %41, %42 : vector<2x1x1xf32>
    %44 = math.rsqrt %43 : vector<2x1x1xf32>
    %45 = vector.broadcast %38 : vector<2x1x128xf32> to vector<2x8x128xf32>
    %46 = arith.mulf %15, %45 : vector<2x8x128xf32>
    %cst_20 = arith.constant dense<0.000000e+00> : vector<2x8xf32>
    %47 = vector.multi_reduction <add>, %46, %cst_20 [2] : vector<2x8x128xf32> to vector<2x8xf32>
    %48 = vector.shape_cast %47 : vector<2x8xf32> to vector<2x8x1xf32>
    %49 = math.absf %48 : vector<2x8x1xf32>
    %50 = vector.broadcast %44 : vector<2x1x1xf32> to vector<2x8x1xf32>
    %51 = arith.mulf %49, %50 : vector<2x8x1xf32>
    %52 = arith.addf %37, %51 : vector<2x8x1xf32>
    %c0_21 = arith.constant 0 : index
    %c2 = arith.constant 2 : index
    %c0_22 = arith.constant 0 : index
    %53 = vector.load %arg2[%c0_21, %c2, %c0_22] : memref<2x8x128xf32, #tpu.memory_space<vmem>>, vector<2x1x128xf32>
    %54 = arith.mulf %53, %53 : vector<2x1x128xf32>
    %cst_23 = arith.constant dense<0.000000e+00> : vector<2x1xf32>
    %55 = vector.multi_reduction <add>, %54, %cst_23 [2] : vector<2x1x128xf32> to vector<2x1xf32>
    %56 = vector.shape_cast %55 : vector<2x1xf32> to vector<2x1x1xf32>
    %cst_24 = arith.constant 1.000000e-24 : f32
    %57 = vector.broadcast %cst_24 : f32 to vector<2x1x1xf32>
    %58 = arith.maximumf %56, %57 : vector<2x1x1xf32>
    %59 = math.rsqrt %58 : vector<2x1x1xf32>
    %60 = vector.broadcast %53 : vector<2x1x128xf32> to vector<2x8x128xf32>
    %61 = arith.mulf %15, %60 : vector<2x8x128xf32>
    %cst_25 = arith.constant dense<0.000000e+00> : vector<2x8xf32>
    %62 = vector.multi_reduction <add>, %61, %cst_25 [2] : vector<2x8x128xf32> to vector<2x8xf32>
    %63 = vector.shape_cast %62 : vector<2x8xf32> to vector<2x8x1xf32>
    %64 = math.absf %63 : vector<2x8x1xf32>
    %65 = vector.broadcast %59 : vector<2x1x1xf32> to vector<2x8x1xf32>
    %66 = arith.mulf %64, %65 : vector<2x8x1xf32>
    %67 = arith.addf %52, %66 : vector<2x8x1xf32>
    %c0_26 = arith.constant 0 : index
    %c3 = arith.constant 3 : index
    %c0_27 = arith.constant 0 : index
    %68 = vector.load %arg2[%c0_26, %c3, %c0_27] : memref<2x8x128xf32, #tpu.memory_space<vmem>>, vector<2x1x128xf32>
    %69 = arith.mulf %68, %68 : vector<2x1x128xf32>
    %cst_28 = arith.constant dense<0.000000e+00> : vector<2x1xf32>
    %70 = vector.multi_reduction <add>, %69, %cst_28 [2] : vector<2x1x128xf32> to vector<2x1xf32>
    %71 = vector.shape_cast %70 : vector<2x1xf32> to vector<2x1x1xf32>
    %cst_29 = arith.constant 1.000000e-24 : f32
    %72 = vector.broadcast %cst_29 : f32 to vector<2x1x1xf32>
    %73 = arith.maximumf %71, %72 : vector<2x1x1xf32>
    %74 = math.rsqrt %73 : vector<2x1x1xf32>
    %75 = vector.broadcast %68 : vector<2x1x128xf32> to vector<2x8x128xf32>
    %76 = arith.mulf %15, %75 : vector<2x8x128xf32>
    %cst_30 = arith.constant dense<0.000000e+00> : vector<2x8xf32>
    %77 = vector.multi_reduction <add>, %76, %cst_30 [2] : vector<2x8x128xf32> to vector<2x8xf32>
    %78 = vector.shape_cast %77 : vector<2x8xf32> to vector<2x8x1xf32>
    %79 = math.absf %78 : vector<2x8x1xf32>
    %80 = vector.broadcast %74 : vector<2x1x1xf32> to vector<2x8x1xf32>
    %81 = arith.mulf %79, %80 : vector<2x8x1xf32>
    %82 = arith.addf %67, %81 : vector<2x8x1xf32>
    %c0_31 = arith.constant 0 : index
    %c4 = arith.constant 4 : index
    %c0_32 = arith.constant 0 : index
    %83 = vector.load %arg2[%c0_31, %c4, %c0_32] : memref<2x8x128xf32, #tpu.memory_space<vmem>>, vector<2x1x128xf32>
    %84 = arith.mulf %83, %83 : vector<2x1x128xf32>
    %cst_33 = arith.constant dense<0.000000e+00> : vector<2x1xf32>
    %85 = vector.multi_reduction <add>, %84, %cst_33 [2] : vector<2x1x128xf32> to vector<2x1xf32>
    %86 = vector.shape_cast %85 : vector<2x1xf32> to vector<2x1x1xf32>
    %cst_34 = arith.constant 1.000000e-24 : f32
    %87 = vector.broadcast %cst_34 : f32 to vector<2x1x1xf32>
    %88 = arith.maximumf %86, %87 : vector<2x1x1xf32>
    %89 = math.rsqrt %88 : vector<2x1x1xf32>
    %90 = vector.broadcast %83 : vector<2x1x128xf32> to vector<2x8x128xf32>
    %91 = arith.mulf %15, %90 : vector<2x8x128xf32>
    %cst_35 = arith.constant dense<0.000000e+00> : vector<2x8xf32>
    %92 = vector.multi_reduction <add>, %91, %cst_35 [2] : vector<2x8x128xf32> to vector<2x8xf32>
    %93 = vector.shape_cast %92 : vector<2x8xf32> to vector<2x8x1xf32>
    %94 = math.absf %93 : vector<2x8x1xf32>
    %95 = vector.broadcast %89 : vector<2x1x1xf32> to vector<2x8x1xf32>
    %96 = arith.mulf %94, %95 : vector<2x8x1xf32>
    %97 = arith.addf %82, %96 : vector<2x8x1xf32>
    %c0_36 = arith.constant 0 : index
    %c5 = arith.constant 5 : index
    %c0_37 = arith.constant 0 : index
    %98 = vector.load %arg2[%c0_36, %c5, %c0_37] : memref<2x8x128xf32, #tpu.memory_space<vmem>>, vector<2x1x128xf32>
    %99 = arith.mulf %98, %98 : vector<2x1x128xf32>
    %cst_38 = arith.constant dense<0.000000e+00> : vector<2x1xf32>
    %100 = vector.multi_reduction <add>, %99, %cst_38 [2] : vector<2x1x128xf32> to vector<2x1xf32>
    %101 = vector.shape_cast %100 : vector<2x1xf32> to vector<2x1x1xf32>
    %cst_39 = arith.constant 1.000000e-24 : f32
    %102 = vector.broadcast %cst_39 : f32 to vector<2x1x1xf32>
    %103 = arith.maximumf %101, %102 : vector<2x1x1xf32>
    %104 = math.rsqrt %103 : vector<2x1x1xf32>
    %105 = vector.broadcast %98 : vector<2x1x128xf32> to vector<2x8x128xf32>
    %106 = arith.mulf %15, %105 : vector<2x8x128xf32>
    %cst_40 = arith.constant dense<0.000000e+00> : vector<2x8xf32>
    %107 = vector.multi_reduction <add>, %106, %cst_40 [2] : vector<2x8x128xf32> to vector<2x8xf32>
    %108 = vector.shape_cast %107 : vector<2x8xf32> to vector<2x8x1xf32>
    %109 = math.absf %108 : vector<2x8x1xf32>
    %110 = vector.broadcast %104 : vector<2x1x1xf32> to vector<2x8x1xf32>
    %111 = arith.mulf %109, %110 : vector<2x8x1xf32>
    %112 = arith.addf %97, %111 : vector<2x8x1xf32>
    %c0_41 = arith.constant 0 : index
    %c6 = arith.constant 6 : index
    %c0_42 = arith.constant 0 : index
    %113 = vector.load %arg2[%c0_41, %c6, %c0_42] : memref<2x8x128xf32, #tpu.memory_space<vmem>>, vector<2x1x128xf32>
    %114 = arith.mulf %113, %113 : vector<2x1x128xf32>
    %cst_43 = arith.constant dense<0.000000e+00> : vector<2x1xf32>
    %115 = vector.multi_reduction <add>, %114, %cst_43 [2] : vector<2x1x128xf32> to vector<2x1xf32>
    %116 = vector.shape_cast %115 : vector<2x1xf32> to vector<2x1x1xf32>
    %cst_44 = arith.constant 1.000000e-24 : f32
    %117 = vector.broadcast %cst_44 : f32 to vector<2x1x1xf32>
    %118 = arith.maximumf %116, %117 : vector<2x1x1xf32>
    %119 = math.rsqrt %118 : vector<2x1x1xf32>
    %120 = vector.broadcast %113 : vector<2x1x128xf32> to vector<2x8x128xf32>
    %121 = arith.mulf %15, %120 : vector<2x8x128xf32>
    %cst_45 = arith.constant dense<0.000000e+00> : vector<2x8xf32>
    %122 = vector.multi_reduction <add>, %121, %cst_45 [2] : vector<2x8x128xf32> to vector<2x8xf32>
    %123 = vector.shape_cast %122 : vector<2x8xf32> to vector<2x8x1xf32>
    %124 = math.absf %123 : vector<2x8x1xf32>
    %125 = vector.broadcast %119 : vector<2x1x1xf32> to vector<2x8x1xf32>
    %126 = arith.mulf %124, %125 : vector<2x8x1xf32>
    %127 = arith.addf %112, %126 : vector<2x8x1xf32>
    %c0_46 = arith.constant 0 : index
    %c7 = arith.constant 7 : index
    %c0_47 = arith.constant 0 : index
    %128 = vector.load %arg2[%c0_46, %c7, %c0_47] : memref<2x8x128xf32, #tpu.memory_space<vmem>>, vector<2x1x128xf32>
    %129 = arith.mulf %128, %128 : vector<2x1x128xf32>
    %cst_48 = arith.constant dense<0.000000e+00> : vector<2x1xf32>
    %130 = vector.multi_reduction <add>, %129, %cst_48 [2] : vector<2x1x128xf32> to vector<2x1xf32>
    %131 = vector.shape_cast %130 : vector<2x1xf32> to vector<2x1x1xf32>
    %cst_49 = arith.constant 1.000000e-24 : f32
    %132 = vector.broadcast %cst_49 : f32 to vector<2x1x1xf32>
    %133 = arith.maximumf %131, %132 : vector<2x1x1xf32>
    %134 = math.rsqrt %133 : vector<2x1x1xf32>
    %135 = vector.broadcast %128 : vector<2x1x128xf32> to vector<2x8x128xf32>
    %136 = arith.mulf %15, %135 : vector<2x8x128xf32>
    %cst_50 = arith.constant dense<0.000000e+00> : vector<2x8xf32>
    %137 = vector.multi_reduction <add>, %136, %cst_50 [2] : vector<2x8x128xf32> to vector<2x8xf32>
    %138 = vector.shape_cast %137 : vector<2x8xf32> to vector<2x8x1xf32>
    %139 = math.absf %138 : vector<2x8x1xf32>
    %140 = vector.broadcast %134 : vector<2x1x1xf32> to vector<2x8x1xf32>
    %141 = arith.mulf %139, %140 : vector<2x8x1xf32>
    %142 = arith.addf %127, %141 : vector<2x8x1xf32>
    %cst_51 = arith.constant 0.000000e+00 : f32
    %143 = vector.broadcast %cst_51 : f32 to vector<1x1x1xf32>
    %144 = vector.shape_cast %19 : vector<2x8x1xf32> to vector<1x2x8x1xf32>
    %cst_52 = arith.constant dense<0.000000e+00> : vector<1xf32>
    %145 = vector.multi_reduction <add>, %144, %cst_52 [1, 2, 3] : vector<1x2x8x1xf32> to vector<1xf32>
    %146 = vector.shape_cast %145 : vector<1xf32> to vector<1x1x1x1xf32>
    %147 = vector.extract %146[0, 0, 0, 0] : f32 from vector<1x1x1x1xf32>
    %148 = vector.broadcast %147 : f32 to vector<1x1x1xf32>
    %149 = arith.addf %143, %148 : vector<1x1x1xf32>
    %c0_53 = arith.constant 0 : index
    %c0_54 = arith.constant 0 : index
    %c0_55 = arith.constant 0 : index
    %150 = vector.load %arg3[%c0_53, %c0_54, %c0_55] : memref<1x1x1xf32, #tpu.memory_space<vmem>>, vector<1x1x1xf32>
    tpu.vector_store %arg3[%c0_53, %c0_54, %c0_55], %149 {strides = array<i32>} : memref<1x1x1xf32, #tpu.memory_space<vmem>>, vector<1x1x1xf32>,
    %cst_56 = arith.constant 0.000000e+00 : f32
    %151 = vector.broadcast %cst_56 : f32 to vector<1x1x1xf32>
    %152 = vector.shape_cast %142 : vector<2x8x1xf32> to vector<1x2x8x1xf32>
    %cst_57 = arith.constant dense<0.000000e+00> : vector<1xf32>
    %153 = vector.multi_reduction <add>, %152, %cst_57 [1, 2, 3] : vector<1x2x8x1xf32> to vector<1xf32>
    %154 = vector.shape_cast %153 : vector<1xf32> to vector<1x1x1x1xf32>
    %155 = vector.extract %154[0, 0, 0, 0] : f32 from vector<1x1x1x1xf32>
    %156 = vector.broadcast %155 : f32 to vector<1x1x1xf32>
    %157 = arith.addf %151, %156 : vector<1x1x1xf32>
    %c0_58 = arith.constant 0 : index
    %c0_59 = arith.constant 0 : index
    %c0_60 = arith.constant 0 : index
    %158 = vector.load %arg4[%c0_58, %c0_59, %c0_60] : memref<1x1x1xf32, #tpu.memory_space<vmem>>, vector<1x1x1xf32>
    tpu.vector_store %arg4[%c0_58, %c0_59, %c0_60], %157 {strides = array<i32>} : memref<1x1x1xf32, #tpu.memory_space<vmem>>, vector<1x1x1xf32>,
    return
  }
  func.func @transform_0(%arg0: i32) -> (i32, i32, i32) {
    %c0_i32 = arith.constant 0 : i32
    %c0_i32_0 = arith.constant 0 : i32
    %c0_i32_1 = arith.constant 0 : i32
    return %arg0, %c0_i32, %c0_i32_0 : i32, i32, i32
  }
  func.func @transform_1(%arg0: i32) -> (i32, i32, i32) {
    %c0_i32 = arith.constant 0 : i32
    %c0_i32_0 = arith.constant 0 : i32
    %c0_i32_1 = arith.constant 0 : i32
    return %arg0, %c0_i32, %c0_i32_0 : i32, i32, i32
  }
  func.func @transform_2(%arg0: i32) -> (i32, i32, i32) {
    %c0_i32 = arith.constant 0 : i32
    %c0_i32_0 = arith.constant 0 : i32
    %c0_i32_1 = arith.constant 0 : i32
    return %arg0, %c0_i32, %c0_i32_0 : i32, i32, i32
  }
  func.func @transform_3(%arg0: i32) -> (i32, i32, i32) {
    %c0_i32 = arith.constant 0 : i32
    %c0_i32_0 = arith.constant 0 : i32
    %c0_i32_1 = arith.constant 0 : i32
    return %arg0, %c0_i32, %c0_i32_0 : i32, i32, i32
  }
}

</mosaic_0001>

<llo_original>
// kernel: tpu_custom_call.1
$region0: #{tpu_custom_call.1}
  #allocation0 [shape = 'u32[]', space=smem, size = 0x4, offset = 0x4, fixed_abs, tag = 'smem constant byte address 0x4 - core index']
  #allocation1 [shape = 'u32[72,128]{1,0:T(1,128)}', space=vmem, size = 0x9000, scoped, tag = 'internal scratch']
  %s0 = inlined_call_operand.hbm [shape: f32[2,8,128], index: 0, kind: input, shape index: {}]
  %s1 = inlined_call_operand.hbm [shape: f32[2,8,128], index: 1, kind: input, shape index: {}]
  %s2 = inlined_call_operand.hbm [shape: f32[1,1,1], index: 2, kind: output, shape index: {0}]
  %s3 = inlined_call_operand.hbm [shape: f32[1,1,1], index: 3, kind: output, shape index: {1}]
  %4 = xla_tuple %s2, %s3
  %s5 = sld [smem:[#allocation0]]
  $region34: #{tpu_custom_call.1} parent=0
    _
  %s7 = ssub.s32 1, %s5
  %s8 = scalar_select 0, %s7, %s5
  $region1: #{tpu_custom_call.1} parent=0
    #allocation2 [shape = 'u8[8192]{0}', space=vmem, size = 0x2000, scoped, tag = 'input window, operand 0, single buffered']
    #allocation3 [shape = 's32[1]{0}', space=sflag, size = 0x4, scoped, tag = 'scoped memory for tpu_custom_call.1']
    #allocation4 [shape = 's32[1]{0}', space=sflag, size = 0x4, scoped, tag = 'scoped memory for tpu_custom_call.1']
    #allocation5 [shape = 'u8[8192]{0}', space=vmem, size = 0x2000, scoped, tag = 'input window, operand 1, single buffered']
    #allocation6 [shape = 's32[1]{0}', space=sflag, size = 0x4, scoped, tag = 'scoped memory for tpu_custom_call.1']
    #allocation7 [shape = 'u8[512]{0}', space=vmem, size = 0x400, scoped, tag = 'output window, operand 0, single buffered']
    #allocation8 [shape = 'u8[512]{0}', space=vmem, size = 0x400, scoped, tag = 'output window, operand 1, single buffered']
    #allocation9 [shape = 's32[1]{0}', space=sflag, size = 0x4, scoped, tag = 'scoped memory for tpu_custom_call.1']
    %9 = vsyncpa [#allocation3], 0
    %10 = vsyncpa [#allocation6], 0
    %11 = vsyncpa [#allocation4], 0
    %12 = vsyncpa [#allocation9], 0
    // Predicated region
    $region2: #{tpu_custom_call.1} parent=1 // pred_check
      _
    $region3: #{tpu_custom_call.1} parent=1 // pred_check_branch
      %14 = sbr.rel (0) target = $region5
    $region4: #{tpu_custom_call.1} parent=1 // pred_region
      %16 = vsyncadd [#allocation3], 0
      %s17 = sshll.u32 %s0, 4
      %s18 = int_to_ptr.hbm [resolvable:$true] %s17
      %s19 = sshll.u32 [#allocation2], 4
      %s20 = int_to_ptr.vmem [resolvable:$true] %s19
      %25 = dma.hbm_to_vmem [thread:$0]  %s18, 256, %s20, [#allocation3], 128, 128, 8
    $region5: #{tpu_custom_call.1} parent=1 // pred_fallthru
      _
    // Predicated region
    $region6: #{tpu_custom_call.1} parent=1 // pred_check
      _
    $region7: #{tpu_custom_call.1} parent=1 // pred_check_branch
      %27 = sbr.rel (0) target = $region9
    $region8: #{tpu_custom_call.1} parent=1 // pred_region
      %29 = vsyncadd [#allocation6], 0
      %s30 = sshll.u32 %s1, 4
      %s31 = int_to_ptr.hbm [resolvable:$true] %s30
      %s32 = sshll.u32 [#allocation5], 4
      %s33 = int_to_ptr.vmem [resolvable:$true] %s32
      %38 = dma.hbm_to_vmem [thread:$0]  %s31, 256, %s33, [#allocation6], 128, 128, 8
    $region9: #{tpu_custom_call.1} parent=1 // pred_fallthru
      _
    // Predicated region
    $region10: #{tpu_custom_call.1} parent=1 // pred_check
      _
    $region11: #{tpu_custom_call.1} parent=1 // pred_check_branch
      %40 = sbr.rel (0) target = $region13
    $region12: #{tpu_custom_call.1} parent=1 // pred_region
      %42 = dma.done [#allocation3], 256
    $region13: #{tpu_custom_call.1} parent=1 // pred_fallthru
      _
    // Predicated region
    $region14: #{tpu_custom_call.1} parent=1 // pred_check
      _
    $region15: #{tpu_custom_call.1} parent=1 // pred_check_branch
      %44 = sbr.rel (0) target = $region17
    $region16: #{tpu_custom_call.1} parent=1 // pred_region
      %46 = dma.done [#allocation6], 256
    $region17: #{tpu_custom_call.1} parent=1 // pred_fallthru
      _
    %v47 = vld [vmem:[#allocation2] sm:$0xff]
    %v48 = vld [vmem:[#allocation2 + $0x8] sm:$0xff]
    %v49 = vld [vmem:[#allocation5] sm:$0xff]
    %v50 = vld [vmem:[#allocation5 + $0x8] sm:$0xff]
    %v51 = vmul.f32 %v47, %v47
    %v52 = vmul.f32 %v48, %v48
    %53 = vadd.xlane.f32.xlu0 %v51
    %v54 = vpop.xlane.xlu0 %53
    %55 = vadd.xlane.f32.xlu0 %v52
    %v56 = vpop.xlane.xlu0 %55
    %v57 = vmax.f32 %v54, 1e-24
    %v58 = vmax.f32 %v56, 1e-24
    %v59 = vrsqrt.pop %v57
    %v60 = vmul.f32 %v59, %v57
    %v61 = vmul.f32 %v60, %v59
    %v62 = vmul.f32 0.5, %v61
    %v63 = vsub.f32 1.5, %v62
    %v64 = vmul.f32 %v59, %v63
    %vm65 = vweird.f32 %v57
    %vm66 = vweird.f32 %v59
    %vm67 = vmor %vm65, %vm66
    %v68 = vsel %vm67, %v59, %v64
    %v69 = vrsqrt.pop %v58
    %v70 = vmul.f32 %v69, %v58
    %v71 = vmul.f32 %v70, %v69
    %v72 = vmul.f32 0.5, %v71
    %v73 = vsub.f32 1.5, %v72
    %v74 = vmul.f32 %v69, %v73
    %vm75 = vweird.f32 %v58
    %vm76 = vweird.f32 %v69
    %vm77 = vmor %vm75, %vm76
    %v78 = vsel %vm77, %v69, %v74
    %v79 = vmul.f32 %v49, %v49
    %v80 = vmul.f32 %v50, %v50
    %81 = vadd.xlane.f32.xlu0 %v79
    %v82 = vpop.xlane.xlu0 %81
    %83 = vadd.xlane.f32.xlu0 %v80
    %v84 = vpop.xlane.xlu0 %83
    %v85 = vmax.f32 %v82, 1e-24
    %v86 = vmax.f32 %v84, 1e-24
    %v87 = vrsqrt.pop %v85
    %v88 = vmul.f32 %v87, %v85
    %v89 = vmul.f32 %v88, %v87
    %v90 = vmul.f32 0.5, %v89
    %v91 = vsub.f32 1.5, %v90
    %v92 = vmul.f32 %v87, %v91
    %vm93 = vweird.f32 %v85
    %vm94 = vweird.f32 %v87
    %vm95 = vmor %vm93, %vm94
    %v96 = vsel %vm95, %v87, %v92
    %v97 = vrsqrt.pop %v86
    %v98 = vmul.f32 %v97, %v86
    %v99 = vmul.f32 %v98, %v97
    %v100 = vmul.f32 0.5, %v99
    %v101 = vsub.f32 1.5, %v100
    %v102 = vmul.f32 %v97, %v101
    %vm103 = vweird.f32 %v86
    %vm104 = vweird.f32 %v97
    %vm105 = vmor %vm103, %vm104
    %v106 = vsel %vm105, %v97, %v102
    %v107 = vmul.f32 %v47, %v68
    %v108 = vmul.f32 %v48, %v78
    %v109 = vmul.f32 %v107, %v49
    %v110 = vmul.f32 %v108, %v50
    %111 = vadd.xlane.f32.xlu0 %v109
    %v112 = vpop.xlane.xlu0 %111
    %113 = vadd.xlane.f32.xlu0 %v110
    %v114 = vpop.xlane.xlu0 %113
    %v115 = vmul.f32 %v112, %v96
    %v116 = vmul.f32 %v114, %v106
    %v117 = vand.u32 2147483647, %v115
    %v118 = vand.u32 2147483647, %v116
    %v119 = vsub.f32 0.0, %v117
    %v120 = vsub.f32 0.0, %v118
    %v121 = vld [vmem:[#allocation5] sm:$0x1]
    %v122 = vld [vmem:[#allocation5 + $0x8] sm:$0x1]
    %v123 = vmul.f32 %v121, %v121
    %v124 = vmul.f32 %v122, %v122
    %vm125 = vcmask 1040384
    %v126 = vsel %vm125, %v123, 0.0
    %127 = vadd.xlane.f32.xlu0 %v126
    %v128 = vpop.xlane.xlu0 %127
    %v129 = vsel %vm125, %v124, 0.0
    %130 = vadd.xlane.f32.xlu0 %v129
    %v131 = vpop.xlane.xlu0 %130
    %v132 = vmax.f32 %v128, 1e-24
    %v133 = vmax.f32 %v131, 1e-24
    %v134 = vrsqrt.pop %v132
    %v135 = vmul.f32 %v134, %v132
    %v136 = vmul.f32 %v135, %v134
    %v137 = vmul.f32 0.5, %v136
    %v138 = vsub.f32 1.5, %v137
    %v139 = vmul.f32 %v134, %v138
    %vm140 = vweird.f32 %v132
    %vm141 = vweird.f32 %v134
    %vm142 = vmor %vm140, %vm141
    %v143 = vsel %vm142, %v134, %v139
    %v144 = vrsqrt.pop %v133
    %v145 = vmul.f32 %v144, %v133
    %v146 = vmul.f32 %v145, %v144
    %v147 = vmul.f32 0.5, %v146
    %v148 = vsub.f32 1.5, %v147
    %v149 = vmul.f32 %v144, %v148
    %vm150 = vweird.f32 %v133
    %vm151 = vweird.f32 %v144
    %vm152 = vmor %vm150, %vm151
    %v153 = vsel %vm152, %v144, %v149
    %v154 = vperm.slane %v121, 0
    %v155 = vperm.slane %v122, 0
    %v156 = vmul.f32 %v107, %v154
    %v157 = vmul.f32 %v108, %v155
    %158 = vadd.xlane.f32.xlu0 %v156
    %v159 = vpop.xlane.xlu0 %158
    %160 = vadd.xlane.f32.xlu0 %v157
    %v161 = vpop.xlane.xlu0 %160
    %v162 = vand.u32 2147483647, %v159
    %v163 = vand.u32 2147483647, %v161
    %v164 = vperm.slane %v143, 0
    %v165 = vperm.slane %v153, 0
    %v166 = vmul.f32 %v162, %v164
    %v167 = vmul.f32 %v163, %v165
    %v168 = vadd.f32 %v119, %v166
    %v169 = vadd.f32 %v120, %v167
    %v170 = vld [vmem:[#allocation5 + $0x1] sm:$0x1]
    %v171 = vld [vmem:[#allocation5 + $0x9] sm:$0x1]
    %v172 = vmul.f32 %v170, %v170
    %v173 = vmul.f32 %v171, %v171
    %v174 = vsel %vm125, %v172, 0.0
    %175 = vadd.xlane.f32.xlu0 %v174
    %v176 = vpop.xlane.xlu0 %175
    %v177 = vsel %vm125, %v173, 0.0
    %178 = vadd.xlane.f32.xlu0 %v177
    %v179 = vpop.xlane.xlu0 %178
    %v180 = vmax.f32 %v176, 1e-24
    %v181 = vmax.f32 %v179, 1e-24
    %v182 = vrsqrt.pop %v180
    %v183 = vmul.f32 %v182, %v180
    %v184 = vmul.f32 %v183, %v182
    %v185 = vmul.f32 0.5, %v184
    %v186 = vsub.f32 1.5, %v185
    %v187 = vmul.f32 %v182, %v186
    %vm188 = vweird.f32 %v180
    %vm189 = vweird.f32 %v182
    %vm190 = vmor %vm188, %vm189
    %v191 = vsel %vm190, %v182, %v187
    %v192 = vrsqrt.pop %v181
    %v193 = vmul.f32 %v192, %v181
    %v194 = vmul.f32 %v193, %v192
    %v195 = vmul.f32 0.5, %v194
    %v196 = vsub.f32 1.5, %v195
    %v197 = vmul.f32 %v192, %v196
    %vm198 = vweird.f32 %v181
    %vm199 = vweird.f32 %v192
    %vm200 = vmor %vm198, %vm199
    %v201 = vsel %vm200, %v192, %v197
    %v202 = vperm.slane %v170, 0
    %v203 = vperm.slane %v171, 0
    %v204 = vmul.f32 %v107, %v202
    %v205 = vmul.f32 %v108, %v203
    %206 = vadd.xlane.f32.xlu0 %v204
    %v207 = vpop.xlane.xlu0 %206
    %208 = vadd.xlane.f32.xlu0 %v205
    %v209 = vpop.xlane.xlu0 %208
    %v210 = vand.u32 2147483647, %v207
    %v211 = vand.u32 2147483647, %v209
    %v212 = vperm.slane %v191, 0
    %v213 = vperm.slane %v201, 0
    %v214 = vmul.f32 %v210, %v212
    %v215 = vmul.f32 %v211, %v213
    %v216 = vadd.f32 %v168, %v214
    %v217 = vadd.f32 %v169, %v215
    %v218 = vld [vmem:[#allocation5 + $0x2] sm:$0x1]
    %v219 = vld [vmem:[#allocation5 + $0xa] sm:$0x1]
    %v220 = vmul.f32 %v218, %v218
    %v221 = vmul.f32 %v219, %v219
    %v222 = vsel %vm125, %v220, 0.0
    %223 = vadd.xlane.f32.xlu0 %v222
    %v224 = vpop.xlane.xlu0 %223
    %v225 = vsel %vm125, %v221, 0.0
    %226 = vadd.xlane.f32.xlu0 %v225
    %v227 = vpop.xlane.xlu0 %226
    %v228 = vmax.f32 %v224, 1e-24
    %v229 = vmax.f32 %v227, 1e-24
    %v230 = vrsqrt.pop %v228
    %v231 = vmul.f32 %v230, %v228
    %v232 = vmul.f32 %v231, %v230
    %v233 = vmul.f32 0.5, %v232
    %v234 = vsub.f32 1.5, %v233
    %v235 = vmul.f32 %v230, %v234
    %vm236 = vweird.f32 %v228
    %vm237 = vweird.f32 %v230
    %vm238 = vmor %vm236, %vm237
    %v239 = vsel %vm238, %v230, %v235
    %v240 = vrsqrt.pop %v229
    %v241 = vmul.f32 %v240, %v229
    %v242 = vmul.f32 %v241, %v240
    %v243 = vmul.f32 0.5, %v242
    %v244 = vsub.f32 1.5, %v243
    %v245 = vmul.f32 %v240, %v244
    %vm246 = vweird.f32 %v229
    %vm247 = vweird.f32 %v240
    %vm248 = vmor %vm246, %vm247
    %v249 = vsel %vm248, %v240, %v245
    %v250 = vperm.slane %v218, 0
    %v251 = vperm.slane %v219, 0
    %v252 = vmul.f32 %v107, %v250
    %v253 = vmul.f32 %v108, %v251
    %254 = vadd.xlane.f32.xlu0 %v252
    %v255 = vpop.xlane.xlu0 %254
    %256 = vadd.xlane.f32.xlu0 %v253
    %v257 = vpop.xlane.xlu0 %256
    %v258 = vand.u32 2147483647, %v255
    %v259 = vand.u32 2147483647, %v257
    %v260 = vperm.slane %v239, 0
    %v261 = vperm.slane %v249, 0
    %v262 = vmul.f32 %v258, %v260
    %v263 = vmul.f32 %v259, %v261
    %v264 = vadd.f32 %v216, %v262
    %v265 = vadd.f32 %v217, %v263
    %v266 = vld [vmem:[#allocation5 + $0x3] sm:$0x1]
    %v267 = vld [vmem:[#allocation5 + $0xb] sm:$0x1]
    %v268 = vmul.f32 %v266, %v266
    %v269 = vmul.f32 %v267, %v267
    %v270 = vsel %vm125, %v268, 0.0
    %271 = vadd.xlane.f32.xlu0 %v270
    %v272 = vpop.xlane.xlu0 %271
    %v273 = vsel %vm125, %v269, 0.0
    %274 = vadd.xlane.f32.xlu0 %v273
    %v275 = vpop.xlane.xlu0 %274
    %v276 = vmax.f32 %v272, 1e-24
    %v277 = vmax.f32 %v275, 1e-24
    %v278 = vrsqrt.pop %v276
    %v279 = vmul.f32 %v278, %v276
    %v280 = vmul.f32 %v279, %v278
    %v281 = vmul.f32 0.5, %v280
    %v282 = vsub.f32 1.5, %v281
    %v283 = vmul.f32 %v278, %v282
    %vm284 = vweird.f32 %v276
    %vm285 = vweird.f32 %v278
    %vm286 = vmor %vm284, %vm285
    %v287 = vsel %vm286, %v278, %v283
    %v288 = vrsqrt.pop %v277
    %v289 = vmul.f32 %v288, %v277
    %v290 = vmul.f32 %v289, %v288
    %v291 = vmul.f32 0.5, %v290
    %v292 = vsub.f32 1.5, %v291
    %v293 = vmul.f32 %v288, %v292
    %vm294 = vweird.f32 %v277
    %vm295 = vweird.f32 %v288
    %vm296 = vmor %vm294, %vm295
    %v297 = vsel %vm296, %v288, %v293
    %v298 = vperm.slane %v266, 0
    %v299 = vperm.slane %v267, 0
    %v300 = vmul.f32 %v107, %v298
    %v301 = vmul.f32 %v108, %v299
    %302 = vadd.xlane.f32.xlu0 %v300
    %v303 = vpop.xlane.xlu0 %302
    %304 = vadd.xlane.f32.xlu0 %v301
    %v305 = vpop.xlane.xlu0 %304
    %v306 = vand.u32 2147483647, %v303
    %v307 = vand.u32 2147483647, %v305
    %v308 = vperm.slane %v287, 0
    %v309 = vperm.slane %v297, 0
    %v310 = vmul.f32 %v306, %v308
    %v311 = vmul.f32 %v307, %v309
    %v312 = vadd.f32 %v264, %v310
    %v313 = vadd.f32 %v265, %v311
    %v314 = vld [vmem:[#allocation5 + $0x4] sm:$0x1]
    %v315 = vld [vmem:[#allocation5 + $0xc] sm:$0x1]
    %v316 = vmul.f32 %v314, %v314
    %v317 = vmul.f32 %v315, %v315
    %v318 = vsel %vm125, %v316, 0.0
    %319 = vadd.xlane.f32.xlu0 %v318
    %v320 = vpop.xlane.xlu0 %319
    %v321 = vsel %vm125, %v317, 0.0
    %322 = vadd.xlane.f32.xlu0 %v321
    %v323 = vpop.xlane.xlu0 %322
    %v324 = vmax.f32 %v320, 1e-24
    %v325 = vmax.f32 %v323, 1e-24
    %v326 = vrsqrt.pop %v324
    %v327 = vmul.f32 %v326, %v324
    %v328 = vmul.f32 %v327, %v326
    %v329 = vmul.f32 0.5, %v328
    %v330 = vsub.f32 1.5, %v329
    %v331 = vmul.f32 %v326, %v330
    %vm332 = vweird.f32 %v324
    %vm333 = vweird.f32 %v326
    %vm334 = vmor %vm332, %vm333
    %v335 = vsel %vm334, %v326, %v331
    %v336 = vrsqrt.pop %v325
    %v337 = vmul.f32 %v336, %v325
    %v338 = vmul.f32 %v337, %v336
    %v339 = vmul.f32 0.5, %v338
    %v340 = vsub.f32 1.5, %v339
    %v341 = vmul.f32 %v336, %v340
    %vm342 = vweird.f32 %v325
    %vm343 = vweird.f32 %v336
    %vm344 = vmor %vm342, %vm343
    %v345 = vsel %vm344, %v336, %v341
    %v346 = vperm.slane %v314, 0
    %v347 = vperm.slane %v315, 0
    %v348 = vmul.f32 %v107, %v346
    %v349 = vmul.f32 %v108, %v347
    %350 = vadd.xlane.f32.xlu0 %v348
    %v351 = vpop.xlane.xlu0 %350
    %352 = vadd.xlane.f32.xlu0 %v349
    %v353 = vpop.xlane.xlu0 %352
    %v354 = vand.u32 2147483647, %v351
    %v355 = vand.u32 2147483647, %v353
    %v356 = vperm.slane %v335, 0
    %v357 = vperm.slane %v345, 0
    %v358 = vmul.f32 %v354, %v356
    %v359 = vmul.f32 %v355, %v357
    %v360 = vadd.f32 %v312, %v358
    %v361 = vadd.f32 %v313, %v359
    %v362 = vld [vmem:[#allocation5 + $0x5] sm:$0x1]
    %v363 = vld [vmem:[#allocation5 + $0xd] sm:$0x1]
    %v364 = vmul.f32 %v362, %v362
    %v365 = vmul.f32 %v363, %v363
    %v366 = vsel %vm125, %v364, 0.0
    %367 = vadd.xlane.f32.xlu0 %v366
    %v368 = vpop.xlane.xlu0 %367
    %v369 = vsel %vm125, %v365, 0.0
    %370 = vadd.xlane.f32.xlu0 %v369
    %v371 = vpop.xlane.xlu0 %370
    %v372 = vmax.f32 %v368, 1e-24
    %v373 = vmax.f32 %v371, 1e-24
    %v374 = vrsqrt.pop %v372
    %v375 = vmul.f32 %v374, %v372
    %v376 = vmul.f32 %v375, %v374
    %v377 = vmul.f32 0.5, %v376
    %v378 = vsub.f32 1.5, %v377
    %v379 = vmul.f32 %v374, %v378
    %vm380 = vweird.f32 %v372
    %vm381 = vweird.f32 %v374
    %vm382 = vmor %vm380, %vm381
    %v383 = vsel %vm382, %v374, %v379
    %v384 = vrsqrt.pop %v373
    %v385 = vmul.f32 %v384, %v373
    %v386 = vmul.f32 %v385, %v384
    %v387 = vmul.f32 0.5, %v386
    %v388 = vsub.f32 1.5, %v387
    %v389 = vmul.f32 %v384, %v388
    %vm390 = vweird.f32 %v373
    %vm391 = vweird.f32 %v384
    %vm392 = vmor %vm390, %vm391
    %v393 = vsel %vm392, %v384, %v389
    %v394 = vperm.slane %v362, 0
    %v395 = vperm.slane %v363, 0
    %v396 = vmul.f32 %v107, %v394
    %v397 = vmul.f32 %v108, %v395
    %398 = vadd.xlane.f32.xlu0 %v396
    %v399 = vpop.xlane.xlu0 %398
    %400 = vadd.xlane.f32.xlu0 %v397
    %v401 = vpop.xlane.xlu0 %400
    %v402 = vand.u32 2147483647, %v399
    %v403 = vand.u32 2147483647, %v401
    %v404 = vperm.slane %v383, 0
    %v405 = vperm.slane %v393, 0
    %v406 = vmul.f32 %v402, %v404
    %v407 = vmul.f32 %v403, %v405
    %v408 = vadd.f32 %v360, %v406
    %v409 = vadd.f32 %v361, %v407
    %v410 = vld [vmem:[#allocation5 + $0x6] sm:$0x1]
    %v411 = vld [vmem:[#allocation5 + $0xe] sm:$0x1]
    %v412 = vmul.f32 %v410, %v410
    %v413 = vmul.f32 %v411, %v411
    %v414 = vsel %vm125, %v412, 0.0
    %415 = vadd.xlane.f32.xlu0 %v414
    %v416 = vpop.xlane.xlu0 %415
    %v417 = vsel %vm125, %v413, 0.0
    %418 = vadd.xlane.f32.xlu0 %v417
    %v419 = vpop.xlane.xlu0 %418
    %v420 = vmax.f32 %v416, 1e-24
    %v421 = vmax.f32 %v419, 1e-24
    %v422 = vrsqrt.pop %v420
    %v423 = vmul.f32 %v422, %v420
    %v424 = vmul.f32 %v423, %v422
    %v425 = vmul.f32 0.5, %v424
    %v426 = vsub.f32 1.5, %v425
    %v427 = vmul.f32 %v422, %v426
    %vm428 = vweird.f32 %v420
    %vm429 = vweird.f32 %v422
    %vm430 = vmor %vm428, %vm429
    %v431 = vsel %vm430, %v422, %v427
    %v432 = vrsqrt.pop %v421
    %v433 = vmul.f32 %v432, %v421
    %v434 = vmul.f32 %v433, %v432
    %v435 = vmul.f32 0.5, %v434
    %v436 = vsub.f32 1.5, %v435
    %v437 = vmul.f32 %v432, %v436
    %vm438 = vweird.f32 %v421
    %vm439 = vweird.f32 %v432
    %vm440 = vmor %vm438, %vm439
    %v441 = vsel %vm440, %v432, %v437
    %v442 = vperm.slane %v410, 0
    %v443 = vperm.slane %v411, 0
    %v444 = vmul.f32 %v107, %v442
    %v445 = vmul.f32 %v108, %v443
    %446 = vadd.xlane.f32.xlu0 %v444
    %v447 = vpop.xlane.xlu0 %446
    %448 = vadd.xlane.f32.xlu0 %v445
    %v449 = vpop.xlane.xlu0 %448
    %v450 = vand.u32 2147483647, %v447
    %v451 = vand.u32 2147483647, %v449
    %v452 = vperm.slane %v431, 0
    %v453 = vperm.slane %v441, 0
    %v454 = vmul.f32 %v450, %v452
    %v455 = vmul.f32 %v451, %v453
    %v456 = vadd.f32 %v408, %v454
    %v457 = vadd.f32 %v409, %v455
    %v458 = vld [vmem:[#allocation5 + $0x7] sm:$0x1]
    %v459 = vld [vmem:[#allocation5 + $0xf] sm:$0x1]
    %v460 = vmul.f32 %v458, %v458
    %v461 = vmul.f32 %v459, %v459
    %v462 = vsel %vm125, %v460, 0.0
    %463 = vadd.xlane.f32.xlu0 %v462
    %v464 = vpop.xlane.xlu0 %463
    %v465 = vsel %vm125, %v461, 0.0
    %466 = vadd.xlane.f32.xlu0 %v465
    %v467 = vpop.xlane.xlu0 %466
    %v468 = vmax.f32 %v464, 1e-24
    %v469 = vmax.f32 %v467, 1e-24
    %v470 = vrsqrt.pop %v468
    %v471 = vmul.f32 %v470, %v468
    %v472 = vmul.f32 %v471, %v470
    %v473 = vmul.f32 0.5, %v472
    %v474 = vsub.f32 1.5, %v473
    %v475 = vmul.f32 %v470, %v474
    %vm476 = vweird.f32 %v468
    %vm477 = vweird.f32 %v470
    %vm478 = vmor %vm476, %vm477
    %v479 = vsel %vm478, %v470, %v475
    %v480 = vrsqrt.pop %v469
    %v481 = vmul.f32 %v480, %v469
    %v482 = vmul.f32 %v481, %v480
    %v483 = vmul.f32 0.5, %v482
    %v484 = vsub.f32 1.5, %v483
    %v485 = vmul.f32 %v480, %v484
    %vm486 = vweird.f32 %v469
    %vm487 = vweird.f32 %v480
    %vm488 = vmor %vm486, %vm487
    %v489 = vsel %vm488, %v480, %v485
    %v490 = vperm.slane %v458, 0
    %v491 = vperm.slane %v459, 0
    %v492 = vmul.f32 %v107, %v490
    %v493 = vmul.f32 %v108, %v491
    %494 = vadd.xlane.f32.xlu0 %v492
    %v495 = vpop.xlane.xlu0 %494
    %496 = vadd.xlane.f32.xlu0 %v493
    %v497 = vpop.xlane.xlu0 %496
    %v498 = vand.u32 2147483647, %v495
    %v499 = vand.u32 2147483647, %v497
    %v500 = vperm.slane %v479, 0
    %v501 = vperm.slane %v489, 0
    %v502 = vmul.f32 %v498, %v500
    %v503 = vmul.f32 %v499, %v501
    %v504 = vadd.f32 %v456, %v502
    %v505 = vadd.f32 %v457, %v503
    %vm506 = vcmask 7168
    %v507 = vsel %vm506, %v115, 0.0
    %v508 = vsel %vm506, %v116, 0.0
    %v509 = vadd.f32 %v507, %v508
    %510 = vadd.xlane.f32.xlu0 %v509
    %v511 = vpop.xlane.xlu0 %510
    %v512 = vrot.slane %v511, 4
    %v513 = vadd.f32 %v511, %v512
    %v514 = vrot.slane %v513, 2
    %v515 = vadd.f32 %v513, %v514
    %v516 = vrot.slane %v515, 1
    %v517 = vadd.f32 %v515, %v516
    %s518 = vtos %v517
    %v519 = vstv %s518
    %v520 = vadd.f32 %v519, 0.0
    %vm521 = vcmask 0
    %522 = vst.msk [vmem:[#allocation7] sm:$0x1] %vm521, %v520
    %v523 = vsel %vm506, %v504, 0.0
    %v524 = vsel %vm506, %v505, 0.0
    %v525 = vadd.f32 %v523, %v524
    %526 = vadd.xlane.f32.xlu0 %v525
    %v527 = vpop.xlane.xlu0 %526
    %v528 = vrot.slane %v527, 4
    %v529 = vadd.f32 %v527, %v528
    %v530 = vrot.slane %v529, 2
    %v531 = vadd.f32 %v529, %v530
    %v532 = vrot.slane %v531, 1
    %v533 = vadd.f32 %v531, %v532
    %s534 = vtos %v533
    %v535 = vstv %s534
    %v536 = vadd.f32 %v535, 0.0
    %537 = vst.msk [vmem:[#allocation8] sm:$0x1] %vm521, %v536
    // Predicated region
    $region18: #{tpu_custom_call.1} parent=1 // pred_check
      _
    $region19: #{tpu_custom_call.1} parent=1 // pred_check_branch
      %539 = sbr.rel (0) target = $region21
    $region20: #{tpu_custom_call.1} parent=1 // pred_region
      %541 = vsyncadd [#allocation4], 0
      %s543 = sshll.u32 [#allocation7], 4
      %s544 = int_to_ptr.vmem [resolvable:$true] %s543
      %s545 = sshll.u32 %s2, 4
      %s546 = int_to_ptr.hbm [resolvable:$true] %s545
      %548 = dma.vmem_to_hbm [thread:$0]  %s544, 16, %s546, [#allocation4]
    $region21: #{tpu_custom_call.1} parent=1 // pred_fallthru
      _
    // Predicated region
    $region22: #{tpu_custom_call.1} parent=1 // pred_check
      _
    $region23: #{tpu_custom_call.1} parent=1 // pred_check_branch
      %550 = sbr.rel (0) target = $region25
    $region24: #{tpu_custom_call.1} parent=1 // pred_region
      %552 = vsyncadd [#allocation9], 0
      %s554 = sshll.u32 [#allocation8], 4
      %s555 = int_to_ptr.vmem [resolvable:$true] %s554
      %s556 = sshll.u32 %s3, 4
      %s557 = int_to_ptr.hbm [resolvable:$true] %s556
      %559 = dma.vmem_to_hbm [thread:$0]  %s555, 16, %s557, [#allocation9]
    $region25: #{tpu_custom_call.1} parent=1 // pred_fallthru
      _
    // Predicated region
    $region26: #{tpu_custom_call.1} parent=1 // pred_check
      _
    $region27: #{tpu_custom_call.1} parent=1 // pred_check_branch
      %561 = sbr.rel (0) target = $region29
    $region28: #{tpu_custom_call.1} parent=1 // pred_region
      %563 = dma.done [#allocation4], 16
    $region29: #{tpu_custom_call.1} parent=1 // pred_fallthru
      _
    // Predicated region
    $region30: #{tpu_custom_call.1} parent=1 // pred_check
      _
    $region31: #{tpu_custom_call.1} parent=1 // pred_check_branch
      %565 = sbr.rel (0) target = $region33
    $region32: #{tpu_custom_call.1} parent=1 // pred_region
      %567 = dma.done [#allocation9], 16
    $region33: #{tpu_custom_call.1} parent=1 // pred_fallthru
      _
    %568 = vsyncpa [#allocation3], 1
    %569 = vsyncpa [#allocation6], 1
    %570 = vsyncpa [#allocation4], 1
    %571 = vsyncpa [#allocation9], 1

</llo_original>
